<compile_context>
chip_gen: v6e
topology: v6e:2x2x1
jax: 0.10.0
libtpu: 0.0.40
codegen_flags: <defaults>
</compile_context>

<pallas_src>
import functools

import jax
import jax.numpy as jnp
import numpy as np
from jax.experimental import pallas as pl
from jax.experimental.pallas import tpu as pltpu

WIN_LENGTH = 5
N = (WIN_LENGTH - 1) // 2                          # = 2
DENOM = float(N * (N + 1) * (2 * N + 1)) / 3.0     # = 10.0
INV_DENOM = 1.0 / DENOM
HALO = 2 * N                                       # 4 columns of x halo per side


def _deltas_deltas_kernel(x_ref, halo_ref, out_ref, *, t_true):
    """One (tf, tt) tile of x -> (x, delta, delta2) for the same tile.

    x_ref    : (tf, tt)     tile j of x (global columns [j*tt, j*tt+tt))
    halo_ref : (1, tf, 8)   4 columns of x left of the tile ++ 4 columns right of it
    out_ref  : (3, tf, tt)  planes (x, delta, delta2)
    t_true   : static true number of time frames; columns >= t_true are padding
    """
    j = pl.program_id(1)
    x = x_ref[...]                                   # (tf, tt)
    halo = halo_ref[0]                               # (tf, 2*HALO)
    tf, tt = x.shape

    # Halo'd window: column k <-> global column j*tt - HALO + k.
    xw = jnp.concatenate([halo[:, :HALO], x, halo[:, HALO:]], axis=1)      # (tf, tt+8)
    gxw = j * tt - HALO + jax.lax.broadcasted_iota(jnp.int32, (1, tt + 2 * HALO), 1)

    # Replicate-edge columns x[:,0] / x[:,T-1], extracted wherever they live in this
    # tile's window (masked lane-reduction; exactly one lane matches whenever the
    # value is actually needed -- in tiles where it is absent the masks below never
    # fire, so the zero result is never used).
    x_lo = jnp.sum(jnp.where(gxw == 0, xw, 0.0), axis=1, keepdims=True)
    x_hi = jnp.sum(jnp.where(gxw == t_true - 1, xw, 0.0), axis=1, keepdims=True)

    # ---- pass 1: delta over the extended region [-2, tt+2) (width tt+4) --------
    w1 = tt + 2 * N
    g1 = gxw[:, HALO - N: HALO - N + w1]             # global column of each d1 lane

    def xs(s):                                       # raw x[g1 + s]
        return xw[:, (HALO - N) + s: (HALO - N) + s + w1]

    p1 = jnp.where(g1 >= t_true - 1, x_hi, xs(1))
    p2 = jnp.where(g1 >= t_true - 2, x_hi, xs(2))
    m1 = jnp.where(g1 < 1, x_lo, xs(-1))
    m2 = jnp.where(g1 < 2, x_lo, xs(-2))
    d1w = ((p1 - m1) + 2.0 * (p2 - m2)) * INV_DENOM  # (tf, tt+4)

    d1_lo = jnp.sum(jnp.where(g1 == 0, d1w, 0.0), axis=1, keepdims=True)
    d1_hi = jnp.sum(jnp.where(g1 == t_true - 1, d1w, 0.0), axis=1, keepdims=True)

    # ---- pass 2: delta-delta over the output region [0, tt) --------------------
    g2 = gxw[:, HALO: HALO + tt]

    def d1s(s):                                      # raw d1[g2 + s]
        return d1w[:, N + s: N + s + tt]

    q1 = jnp.where(g2 >= t_true - 1, d1_hi, d1s(1))
    q2 = jnp.where(g2 >= t_true - 2, d1_hi, d1s(2))
    r1 = jnp.where(g2 < 1, d1_lo, d1s(-1))
    r2 = jnp.where(g2 < 2, d1_lo, d1s(-2))
    d2 = ((q1 - r1) + 2.0 * (q2 - r2)) * INV_DENOM   # (tf, tt)

    out_ref[0, :, :] = x
    out_ref[1, :, :] = d1w[:, N: N + tt]
    out_ref[2, :, :] = d2


def _choose_tiles(F_, T_):
    """Pick (tf, tt, num_t): ~1 MiB f32 input blocks, VMEM independent of T,
    and >= 4 grid steps (>= 2 per v7x TensorCore) whenever possible."""
    TT_MAX = 8192                   # lane-tile cap (multiple of 128)
    TARGET_ELEMS = 256 * 1024       # ~1 MiB float32 per input block

    tt = T_ if T_ <= TT_MAX else TT_MAX
    num_t = -(-T_ // tt)

    f_cap = -(-F_ // 8) * 8                              # F rounded up to sublane multiple
    tf = max(8, min(f_cap, (TARGET_ELEMS // max(tt, 1)) // 8 * 8))

    def n_steps(tf_):
        return (-(-F_ // tf_)) * num_t

    while tf > 8 and n_steps(tf) < 4:
        tf = max(8, (tf // 2) // 8 * 8)
    return tf, tt, num_t


def deltas_deltas(x, f_tile=None, t_tile=None):
    """x: (F, T) float32 -> (3F, T) float32, matching torch.cat((x, d1, d2), 0)."""
    assert x.ndim == 2
    assert x.dtype == jnp.float32, "tiling assumes float32 (8-row sublane multiple)"
    F_, T_ = x.shape

    tf, tt, num_t = _choose_tiles(F_, T_)
    if f_tile is not None:
        tf = f_tile
    if t_tile is not None:
        tt = t_tile
        num_t = -(-T_ // tt)
    assert tf % 8 == 0
    assert tt == T_ or tt % 128 == 0, "t_tile must be a multiple of 128 or the full T"
    num_f = -(-F_ // tf)

    # Tiny halo side-input: for every T tile, the 4 columns of x on each side
    # (exact for interior tile boundaries; clamped at the true edges, where the
    # in-kernel replicate masks make the actual values irrelevant).
    starts = np.arange(num_t, dtype=np.int64) * tt
    cols = np.concatenate(
        [starts[:, None] + np.arange(-HALO, 0)[None, :],
         starts[:, None] + tt + np.arange(0, HALO)[None, :]], axis=1)       # (num_t, 8)
    cols = np.clip(cols, 0, T_ - 1).reshape(-1).astype(np.int32)
    halo = jnp.take(x, jnp.asarray(cols), axis=1)                            # (F, num_t*8)
    halo = halo.reshape(F_, num_t, 2 * HALO).transpose(1, 0, 2)              # (num_t, F, 8)

    kernel = functools.partial(_deltas_deltas_kernel, t_true=T_)

    out3 = pl.pallas_call(
        kernel,
        out_shape=jax.ShapeDtypeStruct((3, F_, T_), x.dtype),
        grid=(num_f, num_t),
        in_specs=[
            pl.BlockSpec((tf, tt), lambda i, j: (i, j)),
            pl.BlockSpec((1, tf, 2 * HALO), lambda i, j: (j, i, 0)),
        ],
        out_specs=pl.BlockSpec((3, tf, tt), lambda i, j: (0, i, j)),
        compiler_params=pltpu.CompilerParams(
            dimension_semantics=("parallel", "parallel"),
            vmem_limit_bytes=32 * 1024 * 1024,   # raise v5e's 16 MiB scoped default
        ),
    )(x, halo)
    # (3, F, T) -> (3F, T) is a free row-major view: rows [0:F]=x, [F:2F]=d1, [2F:3F]=d2.
    return out3.reshape(3 * F_, T_)


# ---- pure-JAX reference (correctness check only) ----
def _ref_compute_deltas(x):
    pad = jnp.pad(x, ((0, 0), (N, N)), mode="edge")
    T_ = x.shape[1]
    out = jnp.zeros_like(x)
    for j in range(-N, N + 1):
        out = out + float(j) * pad[:, j + N: j + N + T_]
    return out / DENOM


def _ref_deltas_deltas(x):
    d1 = _ref_compute_deltas(x)
    d2 = _ref_compute_deltas(d1)
    return jnp.concatenate((x, d1, d2), axis=0)


if __name__ == "__main__":
    key = jax.random.PRNGKey(0)
    k1, k2, k3 = jax.random.split(key, 3)

    # Case 1: mel-spectrogram-like input (auto tiles: tf=16 -> 5 grid steps, single T tile).
    F1, T1 = 80, 512
    x1 = jax.random.normal(k1, (F1, T1), dtype=jnp.float32)
    out1 = jax.block_until_ready(deltas_deltas(x1))
    np.testing.assert_allclose(np.asarray(out1), np.asarray(_ref_deltas_deltas(x1)),
                               rtol=1e-5, atol=1e-5)
    assert out1.shape == (3 * F1, T1)

    # Case 2: force the T-tiled halo path with ragged F and the nastiest ragged
    # T tail (1 valid column in the last tile) to exercise the seam handling.
    F2, T2 = 20, 641
    x2 = jax.random.normal(k2, (F2, T2), dtype=jnp.float32)
    out2 = jax.block_until_ready(deltas_deltas(x2, f_tile=8, t_tile=128))
    np.testing.assert_allclose(np.asarray(out2), np.asarray(_ref_deltas_deltas(x2)),
                               rtol=1e-5, atol=1e-5)
    assert out2.shape == (3 * F2, T2)

    # Case 3: tiny input (all boundary masks active in one block).
    F3, T3 = 4, 7
    x3 = jax.random.normal(k3, (F3, T3), dtype=jnp.float32)
    out3 = jax.block_until_ready(deltas_deltas(x3))
    np.testing.assert_allclose(np.asarray(out3), np.asarray(_ref_deltas_deltas(x3)),
                               rtol=1e-5, atol=1e-5)
    assert out3.shape == (3 * F3, T3)

    print("KERNEL_OK")
</pallas_src>

<mosaic_0001>
module attributes {stable_mosaic.version = 11 : i64} {
  func.func @_deltas_deltas_kernel(%arg0: i32, %arg1: i32, %arg2: memref<16x512xf32, #tpu.memory_space<vmem>>, %arg3: memref<1x16x8xf32, #tpu.memory_space<vmem>>, %arg4: memref<3x16x512xf32, #tpu.memory_space<vmem>>) attributes {dimension_semantics = [#tpu.dimension_semantics<parallel>, #tpu.dimension_semantics<parallel>], iteration_bounds = array<i64: 5, 1>, scalar_prefetch = 0 : i64, scratch_operands = 0 : i64, tpu.core_type = #tpu.core_type<tc>, window_params = [{transform_indices = @transform_0, window_bounds = array<i64: 16, 512>}, {transform_indices = @transform_1, window_bounds = array<i64: 1, 16, 8>}, {transform_indices = @transform_2, window_bounds = array<i64: 3, 16, 512>}]} {
    %c0 = arith.constant 0 : index
    %c0_0 = arith.constant 0 : index
    %0 = vector.load %arg2[%c0, %c0_0] : memref<16x512xf32, #tpu.memory_space<vmem>>, vector<16x512xf32>
    %c0_1 = arith.constant 0 : index
    %c0_2 = arith.constant 0 : index
    %c0_3 = arith.constant 0 : index
    %1 = vector.load %arg3[%c0_1, %c0_2, %c0_3] : memref<1x16x8xf32, #tpu.memory_space<vmem>>, vector<1x16x8xf32>
    %2 = vector.shape_cast %1 : vector<1x16x8xf32> to vector<16x8xf32>
    %3 = vector.extract_strided_slice %2 {offsets = [0, 0], sizes = [16, 4], strides = [1, 1]} : vector<16x8xf32> to vector<16x4xf32>
    %4 = vector.extract_strided_slice %2 {offsets = [0, 4], sizes = [16, 4], strides = [1, 1]} : vector<16x8xf32> to vector<16x4xf32>
    %5 = tpu.concatenate %3, %0, %4 in 1 : vector<16x4xf32>, vector<16x512xf32>, vector<16x4xf32> -> vector<16x520xf32>
    %c512_i32 = arith.constant 512 : i32
    %6 = arith.muli %arg1, %c512_i32 : i32
    %c4_i32 = arith.constant 4 : i32
    %7 = arith.subi %6, %c4_i32 : i32
    %8 = tpu.iota {dimensions = array<i32: 1>} : vector<1x520xi32>
    %9 = vector.broadcast %7 : i32 to vector<1x520xi32>
    %10 = arith.addi %9, %8 : vector<1x520xi32>
    %c0_i32 = arith.constant 0 : i32
    %11 = vector.broadcast %c0_i32 : i32 to vector<1x520xi32>
    %12 = arith.cmpi eq, %10, %11 : vector<1x520xi32>
    %cst = arith.constant 0.000000e+00 : f32
    %13 = vector.shape_cast %12 : vector<1x520xi1> to vector<1x520xi1>
    %14 = vector.broadcast %13 : vector<1x520xi1> to vector<16x520xi1>
    %15 = vector.broadcast %cst : f32 to vector<16x520xf32>
    %16 = arith.select %14, %5, %15 : vector<16x520xi1>, vector<16x520xf32>
    %cst_4 = arith.constant dense<0.000000e+00> : vector<16xf32>
    %17 = vector.multi_reduction <add>, %16, %cst_4 [1] : vector<16x520xf32> to vector<16xf32>
    %18 = vector.shape_cast %17 : vector<16xf32> to vector<16x1xf32>
    %c511_i32 = arith.constant 511 : i32
    %19 = vector.broadcast %c511_i32 : i32 to vector<1x520xi32>
    %20 = arith.cmpi eq, %10, %19 : vector<1x520xi32>
    %cst_5 = arith.constant 0.000000e+00 : f32
    %21 = vector.shape_cast %20 : vector<1x520xi1> to vector<1x520xi1>
    %22 = vector.broadcast %21 : vector<1x520xi1> to vector<16x520xi1>
    %23 = vector.broadcast %cst_5 : f32 to vector<16x520xf32>
    %24 = arith.select %22, %5, %23 : vector<16x520xi1>, vector<16x520xf32>
    %cst_6 = arith.constant dense<0.000000e+00> : vector<16xf32>
    %25 = vector.multi_reduction <add>, %24, %cst_6 [1] : vector<16x520xf32> to vector<16xf32>
    %26 = vector.shape_cast %25 : vector<16xf32> to vector<16x1xf32>
    %27 = vector.extract_strided_slice %10 {offsets = [0, 2], sizes = [1, 516], strides = [1, 1]} : vector<1x520xi32> to vector<1x516xi32>
    %c511_i32_7 = arith.constant 511 : i32
    %28 = vector.broadcast %c511_i32_7 : i32 to vector<1x516xi32>
    %29 = arith.cmpi sge, %27, %28 : vector<1x516xi32>
    %30 = vector.extract_strided_slice %5 {offsets = [0, 3], sizes = [16, 516], strides = [1, 1]} : vector<16x520xf32> to vector<16x516xf32>
    %31 = vector.shape_cast %29 : vector<1x516xi1> to vector<1x516xi1>
    %32 = vector.broadcast %31 : vector<1x516xi1> to vector<16x516xi1>
    %33 = vector.shape_cast %26 : vector<16x1xf32> to vector<16x1xf32>
    %34 = vector.broadcast %33 : vector<16x1xf32> to vector<16x516xf32>
    %35 = arith.select %32, %34, %30 : vector<16x516xi1>, vector<16x516xf32>
    %c510_i32 = arith.constant 510 : i32
    %36 = vector.broadcast %c510_i32 : i32 to vector<1x516xi32>
    %37 = arith.cmpi sge, %27, %36 : vector<1x516xi32>
    %38 = vector.extract_strided_slice %5 {offsets = [0, 4], sizes = [16, 516], strides = [1, 1]} : vector<16x520xf32> to vector<16x516xf32>
    %39 = vector.shape_cast %37 : vector<1x516xi1> to vector<1x516xi1>
    %40 = vector.broadcast %39 : vector<1x516xi1> to vector<16x516xi1>
    %41 = vector.shape_cast %26 : vector<16x1xf32> to vector<16x1xf32>
    %42 = vector.broadcast %41 : vector<16x1xf32> to vector<16x516xf32>
    %43 = arith.select %40, %42, %38 : vector<16x516xi1>, vector<16x516xf32>
    %c1_i32 = arith.constant 1 : i32
    %44 = vector.broadcast %c1_i32 : i32 to vector<1x516xi32>
    %45 = arith.cmpi slt, %27, %44 : vector<1x516xi32>
    %46 = vector.extract_strided_slice %5 {offsets = [0, 1], sizes = [16, 516], strides = [1, 1]} : vector<16x520xf32> to vector<16x516xf32>
    %47 = vector.shape_cast %45 : vector<1x516xi1> to vector<1x516xi1>
    %48 = vector.broadcast %47 : vector<1x516xi1> to vector<16x516xi1>
    %49 = vector.shape_cast %18 : vector<16x1xf32> to vector<16x1xf32>
    %50 = vector.broadcast %49 : vector<16x1xf32> to vector<16x516xf32>
    %51 = arith.select %48, %50, %46 : vector<16x516xi1>, vector<16x516xf32>
    %c2_i32 = arith.constant 2 : i32
    %52 = vector.broadcast %c2_i32 : i32 to vector<1x516xi32>
    %53 = arith.cmpi slt, %27, %52 : vector<1x516xi32>
    %54 = vector.extract_strided_slice %5 {offsets = [0, 0], sizes = [16, 516], strides = [1, 1]} : vector<16x520xf32> to vector<16x516xf32>
    %55 = vector.shape_cast %53 : vector<1x516xi1> to vector<1x516xi1>
    %56 = vector.broadcast %55 : vector<1x516xi1> to vector<16x516xi1>
    %57 = vector.shape_cast %18 : vector<16x1xf32> to vector<16x1xf32>
    %58 = vector.broadcast %57 : vector<16x1xf32> to vector<16x516xf32>
    %59 = arith.select %56, %58, %54 : vector<16x516xi1>, vector<16x516xf32>
    %60 = arith.subf %35, %51 : vector<16x516xf32>
    %61 = arith.subf %43, %59 : vector<16x516xf32>
    %cst_8 = arith.constant 2.000000e+00 : f32
    %62 = vector.broadcast %cst_8 : f32 to vector<16x516xf32>
    %63 = arith.mulf %62, %61 : vector<16x516xf32>
    %64 = arith.addf %60, %63 : vector<16x516xf32>
    %cst_9 = arith.constant 1.000000e-01 : f32
    %65 = vector.broadcast %cst_9 : f32 to vector<16x516xf32>
    %66 = arith.mulf %64, %65 : vector<16x516xf32>
    %c0_i32_10 = arith.constant 0 : i32
    %67 = vector.broadcast %c0_i32_10 : i32 to vector<1x516xi32>
    %68 = arith.cmpi eq, %27, %67 : vector<1x516xi32>
    %cst_11 = arith.constant 0.000000e+00 : f32
    %69 = vector.shape_cast %68 : vector<1x516xi1> to vector<1x516xi1>
    %70 = vector.broadcast %69 : vector<1x516xi1> to vector<16x516xi1>
    %71 = vector.broadcast %cst_11 : f32 to vector<16x516xf32>
    %72 = arith.select %70, %66, %71 : vector<16x516xi1>, vector<16x516xf32>
    %cst_12 = arith.constant dense<0.000000e+00> : vector<16xf32>
    %73 = vector.multi_reduction <add>, %72, %cst_12 [1] : vector<16x516xf32> to vector<16xf32>
    %74 = vector.shape_cast %73 : vector<16xf32> to vector<16x1xf32>
    %c511_i32_13 = arith.constant 511 : i32
    %75 = vector.broadcast %c511_i32_13 : i32 to vector<1x516xi32>
    %76 = arith.cmpi eq, %27, %75 : vector<1x516xi32>
    %cst_14 = arith.constant 0.000000e+00 : f32
    %77 = vector.shape_cast %76 : vector<1x516xi1> to vector<1x516xi1>
    %78 = vector.broadcast %77 : vector<1x516xi1> to vector<16x516xi1>
    %79 = vector.broadcast %cst_14 : f32 to vector<16x516xf32>
    %80 = arith.select %78, %66, %79 : vector<16x516xi1>, vector<16x516xf32>
    %cst_15 = arith.constant dense<0.000000e+00> : vector<16xf32>
    %81 = vector.multi_reduction <add>, %80, %cst_15 [1] : vector<16x516xf32> to vector<16xf32>
    %82 = vector.shape_cast %81 : vector<16xf32> to vector<16x1xf32>
    %83 = vector.extract_strided_slice %10 {offsets = [0, 4], sizes = [1, 512], strides = [1, 1]} : vector<1x520xi32> to vector<1x512xi32>
    %c511_i32_16 = arith.constant 511 : i32
    %84 = vector.broadcast %c511_i32_16 : i32 to vector<1x512xi32>
    %85 = arith.cmpi sge, %83, %84 : vector<1x512xi32>
    %86 = vector.extract_strided_slice %66 {offsets = [0, 3], sizes = [16, 512], strides = [1, 1]} : vector<16x516xf32> to vector<16x512xf32>
    %87 = vector.shape_cast %85 : vector<1x512xi1> to vector<1x512xi1>
    %88 = vector.broadcast %87 : vector<1x512xi1> to vector<16x512xi1>
    %89 = vector.shape_cast %82 : vector<16x1xf32> to vector<16x1xf32>
    %90 = vector.broadcast %89 : vector<16x1xf32> to vector<16x512xf32>
    %91 = arith.select %88, %90, %86 : vector<16x512xi1>, vector<16x512xf32>
    %c510_i32_17 = arith.constant 510 : i32
    %92 = vector.broadcast %c510_i32_17 : i32 to vector<1x512xi32>
    %93 = arith.cmpi sge, %83, %92 : vector<1x512xi32>
    %94 = vector.extract_strided_slice %66 {offsets = [0, 4], sizes = [16, 512], strides = [1, 1]} : vector<16x516xf32> to vector<16x512xf32>
    %95 = vector.shape_cast %93 : vector<1x512xi1> to vector<1x512xi1>
    %96 = vector.broadcast %95 : vector<1x512xi1> to vector<16x512xi1>
    %97 = vector.shape_cast %82 : vector<16x1xf32> to vector<16x1xf32>
    %98 = vector.broadcast %97 : vector<16x1xf32> to vector<16x512xf32>
    %99 = arith.select %96, %98, %94 : vector<16x512xi1>, vector<16x512xf32>
    %c1_i32_18 = arith.constant 1 : i32
    %100 = vector.broadcast %c1_i32_18 : i32 to vector<1x512xi32>
    %101 = arith.cmpi slt, %83, %100 : vector<1x512xi32>
    %102 = vector.extract_strided_slice %66 {offsets = [0, 1], sizes = [16, 512], strides = [1, 1]} : vector<16x516xf32> to vector<16x512xf32>
    %103 = vector.shape_cast %101 : vector<1x512xi1> to vector<1x512xi1>
    %104 = vector.broadcast %103 : vector<1x512xi1> to vector<16x512xi1>
    %105 = vector.shape_cast %74 : vector<16x1xf32> to vector<16x1xf32>
    %106 = vector.broadcast %105 : vector<16x1xf32> to vector<16x512xf32>
    %107 = arith.select %104, %106, %102 : vector<16x512xi1>, vector<16x512xf32>
    %c2_i32_19 = arith.constant 2 : i32
    %108 = vector.broadcast %c2_i32_19 : i32 to vector<1x512xi32>
    %109 = arith.cmpi slt, %83, %108 : vector<1x512xi32>
    %110 = vector.extract_strided_slice %66 {offsets = [0, 0], sizes = [16, 512], strides = [1, 1]} : vector<16x516xf32> to vector<16x512xf32>
    %111 = vector.shape_cast %109 : vector<1x512xi1> to vector<1x512xi1>
    %112 = vector.broadcast %111 : vector<1x512xi1> to vector<16x512xi1>
    %113 = vector.shape_cast %74 : vector<16x1xf32> to vector<16x1xf32>
    %114 = vector.broadcast %113 : vector<16x1xf32> to vector<16x512xf32>
    %115 = arith.select %112, %114, %110 : vector<16x512xi1>, vector<16x512xf32>
    %116 = arith.subf %91, %107 : vector<16x512xf32>
    %117 = arith.subf %99, %115 : vector<16x512xf32>
    %cst_20 = arith.constant 2.000000e+00 : f32
    %118 = vector.broadcast %cst_20 : f32 to vector<16x512xf32>
    %119 = arith.mulf %118, %117 : vector<16x512xf32>
    %120 = arith.addf %116, %119 : vector<16x512xf32>
    %cst_21 = arith.constant 1.000000e-01 : f32
    %121 = vector.broadcast %cst_21 : f32 to vector<16x512xf32>
    %122 = arith.mulf %120, %121 : vector<16x512xf32>
    %c0_22 = arith.constant 0 : index
    %c0_23 = arith.constant 0 : index
    %c0_24 = arith.constant 0 : index
    %123 = vector.load %arg4[%c0_22, %c0_23, %c0_24] : memref<3x16x512xf32, #tpu.memory_space<vmem>>, vector<1x16x512xf32>
    %124 = vector.shape_cast %123 : vector<1x16x512xf32> to vector<16x512xf32>
    %125 = vector.shape_cast %0 : vector<16x512xf32> to vector<1x16x512xf32>
    tpu.vector_store %arg4[%c0_22, %c0_23, %c0_24], %125 {strides = array<i32>} : memref<3x16x512xf32, #tpu.memory_space<vmem>>, vector<1x16x512xf32>,
    %126 = vector.extract_strided_slice %66 {offsets = [0, 2], sizes = [16, 512], strides = [1, 1]} : vector<16x516xf32> to vector<16x512xf32>
    %c1 = arith.constant 1 : index
    %c0_25 = arith.constant 0 : index
    %c0_26 = arith.constant 0 : index
    %127 = vector.load %arg4[%c1, %c0_25, %c0_26] : memref<3x16x512xf32, #tpu.memory_space<vmem>>, vector<1x16x512xf32>
    %128 = vector.shape_cast %127 : vector<1x16x512xf32> to vector<16x512xf32>
    %129 = vector.shape_cast %126 : vector<16x512xf32> to vector<1x16x512xf32>
    tpu.vector_store %arg4[%c1, %c0_25, %c0_26], %129 {strides = array<i32>} : memref<3x16x512xf32, #tpu.memory_space<vmem>>, vector<1x16x512xf32>,
    %c2 = arith.constant 2 : index
    %c0_27 = arith.constant 0 : index
    %c0_28 = arith.constant 0 : index
    %130 = vector.load %arg4[%c2, %c0_27, %c0_28] : memref<3x16x512xf32, #tpu.memory_space<vmem>>, vector<1x16x512xf32>
    %131 = vector.shape_cast %130 : vector<1x16x512xf32> to vector<16x512xf32>
    %132 = vector.shape_cast %122 : vector<16x512xf32> to vector<1x16x512xf32>
    tpu.vector_store %arg4[%c2, %c0_27, %c0_28], %132 {strides = array<i32>} : memref<3x16x512xf32, #tpu.memory_space<vmem>>, vector<1x16x512xf32>,
    return
  }
  func.func @transform_0(%arg0: i32, %arg1: i32) -> (i32, i32) {
    %c0_i32 = arith.constant 0 : i32
    return %arg0, %arg1 : i32, i32
  }
  func.func @transform_1(%arg0: i32, %arg1: i32) -> (i32, i32, i32) {
    %c0_i32 = arith.constant 0 : i32
    %c0_i32_0 = arith.constant 0 : i32
    return %arg1, %arg0, %c0_i32 : i32, i32, i32
  }
  func.func @transform_2(%arg0: i32, %arg1: i32) -> (i32, i32, i32) {
    %c0_i32 = arith.constant 0 : i32
    %c0_i32_0 = arith.constant 0 : i32
    return %c0_i32, %arg0, %arg1 : i32, i32, i32
  }
}

</mosaic_0001>

<llo_original>
// kernel: tpu_custom_call.1
$region0: #{tpu_custom_call.1}
  #allocation0 [shape = 'u32[]', space=smem, size = 0x4, offset = 0x4, fixed_abs, tag = 'smem constant byte address 0x4 - core index']
  #allocation1 [shape = 'u32[144,128]{1,0:T(1,128)}', space=vmem, size = 0x12000, scoped, tag = 'internal scratch']
  #allocation6 [shape = 's32[]', space=sflag, size = 0x4, offset = 0, fixed_abs, tag = 'sflag constant byte address 0x0 - dummy sync flag']
  %s0 = inlined_call_operand.hbm [shape: f32[80,512], index: 0, kind: input, shape index: {}]
  %s1 = inlined_call_operand.vmem [shape: f32[1,80,8], index: 1, kind: input, shape index: {}]
  %s2 = inlined_call_operand.hbm [shape: f32[3,80,512], index: 2, kind: output, shape index: {}]
  %s3 = sld [smem:[#allocation0]]
  $region45: #{tpu_custom_call.1} parent=0
    _
  %s5 = ssub.s32 1, %s3
  %s6 = scalar_select 0, %s5, %s3
  $region1: #{tpu_custom_call.1} parent=0
    #allocation2 [shape = 'u8[65536]{0}', space=vmem, size = 0x10000, scoped, tag = 'input window, operand 0']
    #allocation3 [shape = 's32[2]{0}', space=sflag, size = 0x8, scoped, tag = 'scoped memory for tpu_custom_call.1']
    #allocation4 [shape = 's32[2]{0}', space=sflag, size = 0x8, scoped, tag = 'scoped memory for tpu_custom_call.1']
    #allocation5 [shape = 'u8[196608]{0}', space=vmem, size = 0x30000, scoped, tag = 'output window, operand 0']
    %7 = vsyncpa [#allocation3], 0
    %s8 = scalar_lea.sflag [#allocation3], 1
    %9 = vsyncpa %s8, 0
    %10 = vsyncpa [#allocation4], 0
    %s11 = scalar_lea.sflag [#allocation4], 1
    %12 = vsyncpa %s11, 0
    loop: start=0, step=1, limit=7
    $region2: #{tpu_custom_call.1} parent=1 // loop_pre_header
      _
    $region3: #{tpu_custom_call.1} parent=1 // loop_header
      %s14 = sphi 0, %s18
      %p15 = scmp.ge.s32.totalorder %s14, 7
      %s21 = sphi 0, %s33
      %s22 = sphi 0, %s29
      %s23 = sphi 0, %s21
      %s24 = sphi 0, %s22
      %s25 = sphi 0, %s23
      %s26 = sphi 0, %s24
      %s38 = sphi 0, %s40
      %s41 = sphi 0, %s38
      %s42 = sphi 0, %s41
      %s58 = sphi 0, %s42
      %s66 = sphi 0, %s68
      %s69 = sphi 0, %s66
      %s70 = sphi 0, %s69
      %s86 = sphi 0, %s70
      %s94 = sphi 0, %s96
      %s97 = sphi 0, %s94
      %s98 = sphi 0, %s97
      %s114 = sphi 0, %s98
    $region4: #{tpu_custom_call.1} parent=1 // loop_header_branch
      %17 = sbr.rel (%p15) target = $region8
    $region5: #{tpu_custom_call.1} parent=1 // loop_body
      %s19 = ssub.s32 %s14, 1
      %s20 = ssub.s32 %s14, 2
      %s27 = sadd.s32 1, %s22
      %p28 = scmp.ge.s32.totalorder %s27, 1
      %s29 = scalar_select %p28, 0, %s27
      %s30 = sadd.s32 1, %s21
      %s31 = scalar_select %p28, %s30, %s21
      %p32 = scmp.ge.s32.totalorder %s31, 5
      %s33 = scalar_select %p32, 0, %s31
      %s34 = ssub.s32 %s21, %s33
      %s35 = ssub.s32 %s22, %s29
      %s36 = sor.u32 %s34, %s35
      %p37 = scmp.eq.s32.totalorder %s36, 0
      %s39 = sadd.s32 %s38, 1
      %s40 = scalar_select %p37, %s38, %s39
      %p43 = pneg %p37
      %p44 = scmp.eq.s32.totalorder %s14, 4
      %p45 = por %p43, %p44
      %p46 = scmp.ne.s32.totalorder %s38, %s41
      %p47 = scmp.eq.s32.totalorder %s14, 0
      %p48 = por %p46, %p47
      %p49 = scmp.ne.s32.totalorder %s38, %s41
      %p50 = scmp.eq.s32.totalorder %s19, 4
      %p51 = por %p49, %p50
      %p52 = scmp.ne.s32.totalorder %s41, %s42
      %p53 = scmp.eq.s32.totalorder %s19, 0
      %p54 = por %p52, %p53
      %p55 = scmp.ne.s32.totalorder %s41, %s42
      %p56 = scmp.eq.s32.totalorder %s20, 4
      %p57 = por %p55, %p56
      %p59 = scmp.ne.s32.totalorder %s42, %s58
      %p60 = scmp.eq.s32.totalorder %s20, 0
      %p61 = por %p59, %p60
      %s62 = ssub.s32 %s22, %s29
      %s63 = ssub.s32 %s21, %s33
      %s64 = sor.u32 %s62, %s63
      %p65 = scmp.eq.s32.totalorder %s64, 0
      %s67 = sadd.s32 %s66, 1
      %s68 = scalar_select %p65, %s66, %s67
      %p71 = pneg %p65
      %p72 = scmp.eq.s32.totalorder %s14, 4
      %p73 = por %p71, %p72
      %p74 = scmp.ne.s32.totalorder %s66, %s69
      %p75 = scmp.eq.s32.totalorder %s14, 0
      %p76 = por %p74, %p75
      %p77 = scmp.ne.s32.totalorder %s66, %s69
      %p78 = scmp.eq.s32.totalorder %s19, 4
      %p79 = por %p77, %p78
      %p80 = scmp.ne.s32.totalorder %s69, %s70
      %p81 = scmp.eq.s32.totalorder %s19, 0
      %p82 = por %p80, %p81
      %p83 = scmp.ne.s32.totalorder %s69, %s70
      %p84 = scmp.eq.s32.totalorder %s20, 4
      %p85 = por %p83, %p84
      %p87 = scmp.ne.s32.totalorder %s70, %s86
      %p88 = scmp.eq.s32.totalorder %s20, 0
      %p89 = por %p87, %p88
      %s90 = ssub.s32 %s21, %s33
      %s91 = ssub.s32 %s22, %s29
      %s92 = sor.u32 %s90, %s91
      %p93 = scmp.eq.s32.totalorder %s92, 0
      %s95 = sadd.s32 %s94, 1
      %s96 = scalar_select %p93, %s94, %s95
      %p99 = pneg %p93
      %p100 = scmp.eq.s32.totalorder %s14, 4
      %p101 = por %p99, %p100
      %p102 = scmp.ne.s32.totalorder %s94, %s97
      %p103 = scmp.eq.s32.totalorder %s14, 0
      %p104 = por %p102, %p103
      %p105 = scmp.ne.s32.totalorder %s94, %s97
      %p106 = scmp.eq.s32.totalorder %s19, 4
      %p107 = por %p105, %p106
      %p108 = scmp.ne.s32.totalorder %s97, %s98
      %p109 = scmp.eq.s32.totalorder %s19, 0
      %p110 = por %p108, %p109
      %p111 = scmp.ne.s32.totalorder %s97, %s98
      %p112 = scmp.eq.s32.totalorder %s20, 4
      %p113 = por %p111, %p112
      %p115 = scmp.ne.s32.totalorder %s98, %s114
      %p116 = scmp.eq.s32.totalorder %s20, 0
      %p117 = por %p115, %p116
      %p118 = scmp.le.s32.totalorder 1, %s14
      %p119 = scmp.lt.s32.totalorder %s14, 6
      %p120 = pnand %p118, %p119
      %p121 = pneg %p120
      // Predicated region
      $region9: #{tpu_custom_call.1} parent=5 // pred_check
        _
      $region10: #{tpu_custom_call.1} parent=5 // pred_check_branch
        %123 = sbr.rel (%p120) target = $region12
      $region11: #{tpu_custom_call.1} parent=5 // pred_region
        %s124 = ssub.s32 %s14, 1
      $region12: #{tpu_custom_call.1} parent=5 // pred_fallthru
        _
      %p125 = scmp.lt.s32.totalorder %s14, 5
      // Predicated region
      $region13: #{tpu_custom_call.1} parent=5 // pred_check
        %p126 = pneg %p125
      $region14: #{tpu_custom_call.1} parent=5 // pred_check_branch
        %128 = sbr.rel (%p126) target = $region16
      $region15: #{tpu_custom_call.1} parent=5 // pred_region
        // Predicated region
        $region17: #{tpu_custom_call.1} parent=15 // pred_check
          %p129 = pneg %p48
        $region18: #{tpu_custom_call.1} parent=15 // pred_check_branch
          %131 = sbr.rel (%p129) target = $region20
        $region19: #{tpu_custom_call.1} parent=15 // pred_region
          %s132 = sand.u32 %s38, 1
          %s133 = scalar_lea.sflag [#allocation3], %s132
          %s134 = sand.u32 %s38, 1
          %s135 = smul.addr %s134, 64
          %s136 = scalar_lea.vmem [#allocation2], %s135
          %s137 = smul.u32 2, %s21
          %s138 = smul.u32 4, %s22
          %s140 = ssub.s32 1024, 1024
          %141 = vsyncadd %s133, %s140
          %s142 = smul.addr %s137, 4
          %s143 = sadd.s32 %s138, %s142
          %s144 = smul.addr %s143, 128
          %s145 = scalar_lea.hbm %s0, %s144
          %s146 = sshll.u32 %s136, 4
          %s147 = int_to_ptr.vmem [resolvable:$true] %s146
          %152 = dma.hbm_to_vmem [thread:$0]  %s145, 1024, %s147, %s133, 512, 512, 32
        $region20: #{tpu_custom_call.1} parent=15 // pred_fallthru
          _
        // Predicated region
        $region21: #{tpu_custom_call.1} parent=15 // pred_check
          %p153 = pneg %p76
        $region22: #{tpu_custom_call.1} parent=15 // pred_check_branch
          %155 = sbr.rel (%p153) target = $region24
        $region23: #{tpu_custom_call.1} parent=15 // pred_region
          %s156 = smul.u32 2, %s21
          %p157 = scmp.lt.s32.totalorder %s22, 0
          %s158 = scalar_select %p157, %s22, 0
          %p159 = scmp.lt.s32.totalorder %s156, 9
          %s160 = scalar_select %p159, %s156, 9
          %s161 = smul.addr %s158, 10
          %s162 = sadd.s32 %s160, %s161
          %s163 = smul.addr %s162, 8
          %s164 = scalar_lea.vmem %s1, %s163
          %s165 = smul.u32 2, %s21
        $region24: #{tpu_custom_call.1} parent=15 // pred_fallthru
          _
      $region16: #{tpu_custom_call.1} parent=5 // pred_fallthru
        _
      %p166 = scmp.le.s32.totalorder 1, %s14
      %p167 = scmp.lt.s32.totalorder %s14, 6
      %p168 = pnand %p166, %p167
      %p169 = pneg %p168
      // Predicated region
      $region25: #{tpu_custom_call.1} parent=5 // pred_check
        _
      $region26: #{tpu_custom_call.1} parent=5 // pred_check_branch
        %171 = sbr.rel (%p168) target = $region28
      $region27: #{tpu_custom_call.1} parent=5 // pred_region
        %s172 = ssub.s32 %s14, 1
        %s173 = sand.u32 %s41, 1
        %s174 = scalar_lea.sflag [#allocation3], %s173
        %s175 = sand.u32 %s41, 1
        %s176 = smul.addr %s175, 64
        %s177 = scalar_lea.vmem [#allocation2], %s176
        // Predicated region
        $region29: #{tpu_custom_call.1} parent=27 // pred_check
          %p178 = pneg %p54
        $region30: #{tpu_custom_call.1} parent=27 // pred_check_branch
          %180 = sbr.rel (%p178) target = $region32
        $region31: #{tpu_custom_call.1} parent=27 // pred_region
          %181 = dma.done %s174, 1024
        $region32: #{tpu_custom_call.1} parent=27 // pred_fallthru
          _
        %s182 = sand.u32 %s41, 1
        %s183 = scalar_lea.sflag [#allocation3], %s182
        %s184 = sand.u32 %s41, 1
        %s185 = smul.addr %s184, 64
        %s186 = scalar_lea.vmem [#allocation2], %s185
        %p187 = pneg %p54
        %p188 = pneg %p51
        %s189 = smul.u32 2, %s23
        %p190 = scmp.lt.s32.totalorder %s24, 0
        %s191 = scalar_select %p190, %s24, 0
        %p192 = scmp.lt.s32.totalorder %s189, 9
        %s193 = scalar_select %p192, %s189, 9
        %s194 = smul.addr %s191, 10
        %s195 = sadd.s32 %s193, %s194
        %s196 = smul.addr %s195, 8
        %s197 = scalar_lea.vmem %s1, %s196
        %p198 = pneg %p82
        %p199 = pneg %p79
        %p200 = pneg %p110
        %p201 = pneg %p107
        %s202 = sand.u32 %s97, 1
        %s203 = scalar_lea.sflag [#allocation4], %s202
        %s204 = sand.u32 %s97, 1
        %s205 = smul.addr %s204, 192
        %s206 = scalar_lea.vmem [#allocation5], %s205
        %s207 = smul.u32 2, %s23
        %s208 = smul.u32 4, %s24
        %s209 = smul.u32 2, %s23
        %p210 = scmp.lt.s32.totalorder %s24, 0
        %s211 = scalar_select %p210, %s24, 0
        %p212 = scmp.lt.s32.totalorder %s209, 9
        %s213 = scalar_select %p212, %s209, 9
        %s214 = smul.addr %s211, 10
        %s215 = sadd.s32 %s213, %s214
        %s216 = smul.addr %s215, 8
        %s217 = scalar_lea.vmem %s1, %s216
        %s218 = smul.u32 2, %s23
        %s219 = smul.u32 2, %s23
        %s220 = smul.u32 4, %s24
        %v221 = vld [vmem:[%s177] sm:$0xff]
        %v222 = vld [vmem:[%s177 + $0x8] sm:$0xff]
        %v223 = vld [vmem:[%s177 + $0x10] sm:$0xff]
        %v224 = vld [vmem:[%s177 + $0x18] sm:$0xff]
        %v225 = vld [vmem:[%s177 + $0x20] sm:$0xff]
        %v226 = vld [vmem:[%s177 + $0x28] sm:$0xff]
        %v227 = vld [vmem:[%s177 + $0x30] sm:$0xff]
        %v228 = vld [vmem:[%s177 + $0x38] sm:$0xff]
        %v229 = vld [vmem:[%s217] sm:$0xff]
        %v230 = vld [vmem:[%s217 + $0x8] sm:$0xff]
        %239 = vrot.lane.b32.xlu0 %v221, 4
        %v240 = vpop.permute.xlu0 %239
        %241 = vrot.lane.b32.xlu0 %v222, 4
        %v242 = vpop.permute.xlu0 %241
        %243 = vrot.lane.b32.xlu0 %v223, 4
        %v244 = vpop.permute.xlu0 %243
        %245 = vrot.lane.b32.xlu0 %v224, 4
        %v246 = vpop.permute.xlu0 %245
        %247 = vrot.lane.b32.xlu0 %v225, 4
        %v248 = vpop.permute.xlu0 %247
        %249 = vrot.lane.b32.xlu0 %v226, 4
        %v250 = vpop.permute.xlu0 %249
        %251 = vrot.lane.b32.xlu0 %v227, 4
        %v252 = vpop.permute.xlu0 %251
        %253 = vrot.lane.b32.xlu0 %v228, 4
        %v254 = vpop.permute.xlu0 %253
        %vm255 = vcmask 31744
        %v256 = vsel %vm255, %v240, %v242
        %v257 = vsel %vm255, %v242, %v244
        %v258 = vsel %vm255, %v244, %v246
        %v259 = vsel %vm255, %v248, %v250
        %v260 = vsel %vm255, %v250, %v252
        %v261 = vsel %vm255, %v252, %v254
        %v272 = vsel %vm255, %v229, %v240
        %v273 = vsel %vm255, %v230, %v248
        %v274 = vsel %vm255, %v246, %v229
        %v275 = vsel %vm255, %v254, %v230
        %s276 = smul.u32 %s24, 512
        %s277 = ssub.s32 %s276, 4
        %v278 = vlaneseq
        %v279 = vand.u32 %v278, 127
        %v280 = vadd.s32 %v279, 128
        %v281 = vadd.s32 %v279, 256
        %v282 = vadd.s32 %v279, 384
        %v283 = vadd.s32 %v279, 512
        %v284 = vstv %s277
        %v285 = vadd.s32 %v284, %v279
        %v286 = vadd.s32 %v284, %v280
        %v287 = vadd.s32 %v284, %v281
        %v288 = vadd.s32 %v284, %v282
        %v289 = vadd.s32 %v284, %v283
        %vm290 = vcmp.eq.s32.totalorder %v285, 0
        %vm291 = vcmp.eq.s32.totalorder %v286, 0
        %vm292 = vcmp.eq.s32.totalorder %v287, 0
        %vm293 = vcmp.eq.s32.totalorder %v288, 0
        %vm294 = vcmp.eq.s32.totalorder %v289, 0
        %v295 = vsel %vm290, 1, 0
        %v296 = vsel %vm291, 1, 0
        %v297 = vsel %vm292, 1, 0
        %v298 = vsel %vm293, 1, 0
        %v299 = vsel %vm294, 1, 0
        %vm300 = vcmp.eq.s32.totalorder %v295, 1
        %vm301 = vcmp.eq.s32.totalorder %v296, 1
        %vm302 = vcmp.eq.s32.totalorder %v297, 1
        %vm303 = vcmp.eq.s32.totalorder %v298, 1
        %vm304 = vcmp.eq.s32.totalorder %v299, 1
        %v305 = vsel %vm300, %v272, 0.0
        %v306 = vsel %vm301, %v256, 0.0
        %v307 = vsel %vm302, %v257, 0.0
        %v308 = vsel %vm303, %v258, 0.0
        %v309 = vsel %vm304, %v274, 0.0
        %v310 = vsel %vm300, %v273, 0.0
        %v311 = vsel %vm301, %v259, 0.0
        %v312 = vsel %vm302, %v260, 0.0
        %v313 = vsel %vm303, %v261, 0.0
        %v314 = vsel %vm304, %v275, 0.0
        %v315 = vadd.f32 %v305, %v306
        %v316 = vadd.f32 %v315, %v307
        %v317 = vadd.f32 %v316, %v308
        %vm318 = vcmask 64512
        %v319 = vsel %vm318, %v309, 0.0
        %v320 = vadd.f32 %v317, %v319
        %321 = vadd.xlane.f32.xlu0 %v320
        %v322 = vpop.xlane.xlu0 %321
        %v323 = vadd.f32 %v310, %v311
        %v324 = vadd.f32 %v323, %v312
        %v325 = vadd.f32 %v324, %v313
        %v326 = vsel %vm318, %v314, 0.0
        %v327 = vadd.f32 %v325, %v326
        %328 = vadd.xlane.f32.xlu0 %v327
        %v329 = vpop.xlane.xlu0 %328
        %vm330 = vcmp.eq.s32.totalorder %v285, 511
        %vm331 = vcmp.eq.s32.totalorder %v286, 511
        %vm332 = vcmp.eq.s32.totalorder %v287, 511
        %vm333 = vcmp.eq.s32.totalorder %v288, 511
        %vm334 = vcmp.eq.s32.totalorder %v289, 511
        %v335 = vsel %vm330, 1, 0
        %v336 = vsel %vm331, 1, 0
        %v337 = vsel %vm332, 1, 0
        %v338 = vsel %vm333, 1, 0
        %v339 = vsel %vm334, 1, 0
        %vm340 = vcmp.eq.s32.totalorder %v335, 1
        %vm341 = vcmp.eq.s32.totalorder %v336, 1
        %vm342 = vcmp.eq.s32.totalorder %v337, 1
        %vm343 = vcmp.eq.s32.totalorder %v338, 1
        %vm344 = vcmp.eq.s32.totalorder %v339, 1
        %v345 = vsel %vm340, %v272, 0.0
        %v346 = vsel %vm341, %v256, 0.0
        %v347 = vsel %vm342, %v257, 0.0
        %v348 = vsel %vm343, %v258, 0.0
        %v349 = vsel %vm344, %v274, 0.0
        %v350 = vsel %vm340, %v273, 0.0
        %v351 = vsel %vm341, %v259, 0.0
        %v352 = vsel %vm342, %v260, 0.0
        %v353 = vsel %vm343, %v261, 0.0
        %v354 = vsel %vm344, %v275, 0.0
        %v355 = vadd.f32 %v345, %v346
        %v356 = vadd.f32 %v355, %v347
        %v357 = vadd.f32 %v356, %v348
        %v358 = vsel %vm318, %v349, 0.0
        %v359 = vadd.f32 %v357, %v358
        %360 = vadd.xlane.f32.xlu0 %v359
        %v361 = vpop.xlane.xlu0 %360
        %v362 = vadd.f32 %v350, %v351
        %v363 = vadd.f32 %v362, %v352
        %v364 = vadd.f32 %v363, %v353
        %v365 = vsel %vm318, %v354, 0.0
        %v366 = vadd.f32 %v364, %v365
        %367 = vadd.xlane.f32.xlu0 %v366
        %v368 = vpop.xlane.xlu0 %367
        %vm369 = vcmp.ge.s32.totalorder %v285, 511
        %vm370 = vcmp.ge.s32.totalorder %v286, 511
        %vm371 = vcmp.ge.s32.totalorder %v287, 511
        %vm372 = vcmp.ge.s32.totalorder %v288, 511
        %vm373 = vcmp.ge.s32.totalorder %v289, 511
        %v374 = vsel %vm369, 1, 0
        %v375 = vsel %vm370, 1, 0
        %v376 = vsel %vm371, 1, 0
        %v377 = vsel %vm372, 1, 0
        %v378 = vsel %vm373, 1, 0
        %vm379 = vcmp.eq.s32.totalorder %v374, 1
        %vm380 = vcmp.eq.s32.totalorder %v375, 1
        %vm381 = vcmp.eq.s32.totalorder %v376, 1
        %vm382 = vcmp.eq.s32.totalorder %v377, 1
        %vm383 = vcmp.eq.s32.totalorder %v378, 1
        %388 = vrot.lane.b32.xlu0 %v272, 127
        %v389 = vpop.permute.xlu0 %388
        %390 = vrot.lane.b32.xlu0 %v256, 127
        %v391 = vpop.permute.xlu0 %390
        %392 = vrot.lane.b32.xlu0 %v257, 127
        %v393 = vpop.permute.xlu0 %392
        %394 = vrot.lane.b32.xlu0 %v258, 127
        %v395 = vpop.permute.xlu0 %394
        %396 = vrot.lane.b32.xlu0 %v274, 127
        %v397 = vpop.permute.xlu0 %396
        %398 = vrot.lane.b32.xlu0 %v273, 127
        %v399 = vpop.permute.xlu0 %398
        %400 = vrot.lane.b32.xlu0 %v259, 127
        %v401 = vpop.permute.xlu0 %400
        %402 = vrot.lane.b32.xlu0 %v260, 127
        %v403 = vpop.permute.xlu0 %402
        %404 = vrot.lane.b32.xlu0 %v261, 127
        %v405 = vpop.permute.xlu0 %404
        %406 = vrot.lane.b32.xlu0 %v275, 127
        %v407 = vpop.permute.xlu0 %406
        %vm408 = vcmask 1039360
        %v409 = vsel %vm408, %v389, %v391
        %v410 = vsel %vm408, %v391, %v393
        %v411 = vsel %vm408, %v393, %v395
        %v412 = vsel %vm408, %v395, %v397
        %v413 = vsel %vm408, %v399, %v401
        %v414 = vsel %vm408, %v401, %v403
        %v415 = vsel %vm408, %v403, %v405
        %v416 = vsel %vm408, %v405, %v407
        %v427 = vsel %vm379, %v361, %v409
        %v428 = vsel %vm380, %v361, %v410
        %v429 = vsel %vm381, %v361, %v411
        %v430 = vsel %vm382, %v361, %v412
        %v431 = vsel %vm383, %v361, %v397
        %v432 = vsel %vm379, %v368, %v413
        %v433 = vsel %vm380, %v368, %v414
        %v434 = vsel %vm381, %v368, %v415
        %v435 = vsel %vm382, %v368, %v416
        %v436 = vsel %vm383, %v368, %v407
        %vm437 = vcmp.ge.s32.totalorder %v285, 510
        %vm438 = vcmp.ge.s32.totalorder %v286, 510
        %vm439 = vcmp.ge.s32.totalorder %v287, 510
        %vm440 = vcmp.ge.s32.totalorder %v288, 510
        %vm441 = vcmp.ge.s32.totalorder %v289, 510
        %v442 = vsel %vm437, 1, 0
        %v443 = vsel %vm438, 1, 0
        %v444 = vsel %vm439, 1, 0
        %v445 = vsel %vm440, 1, 0
        %v446 = vsel %vm441, 1, 0
        %vm447 = vcmp.eq.s32.totalorder %v442, 1
        %vm448 = vcmp.eq.s32.totalorder %v443, 1
        %vm449 = vcmp.eq.s32.totalorder %v444, 1
        %vm450 = vcmp.eq.s32.totalorder %v445, 1
        %vm451 = vcmp.eq.s32.totalorder %v446, 1
        %452 = vrot.lane.b32.xlu0 %v272, 126
        %v453 = vpop.permute.xlu0 %452
        %454 = vrot.lane.b32.xlu0 %v256, 126
        %v455 = vpop.permute.xlu0 %454
        %456 = vrot.lane.b32.xlu0 %v257, 126
        %v457 = vpop.permute.xlu0 %456
        %458 = vrot.lane.b32.xlu0 %v258, 126
        %v459 = vpop.permute.xlu0 %458
        %460 = vrot.lane.b32.xlu0 %v274, 126
        %v461 = vpop.permute.xlu0 %460
        %462 = vrot.lane.b32.xlu0 %v273, 126
        %v463 = vpop.permute.xlu0 %462
        %464 = vrot.lane.b32.xlu0 %v259, 126
        %v465 = vpop.permute.xlu0 %464
        %466 = vrot.lane.b32.xlu0 %v260, 126
        %v467 = vpop.permute.xlu0 %466
        %468 = vrot.lane.b32.xlu0 %v261, 126
        %v469 = vpop.permute.xlu0 %468
        %470 = vrot.lane.b32.xlu0 %v275, 126
        %v471 = vpop.permute.xlu0 %470
        %vm472 = vcmask 1031168
        %v473 = vsel %vm472, %v453, %v455
        %v474 = vsel %vm472, %v455, %v457
        %v475 = vsel %vm472, %v457, %v459
        %v476 = vsel %vm472, %v459, %v461
        %v477 = vsel %vm472, %v463, %v465
        %v478 = vsel %vm472, %v465, %v467
        %v479 = vsel %vm472, %v467, %v469
        %v480 = vsel %vm472, %v469, %v471
        %v491 = vsel %vm447, %v361, %v473
        %v492 = vsel %vm448, %v361, %v474
        %v493 = vsel %vm449, %v361, %v475
        %v494 = vsel %vm450, %v361, %v476
        %v495 = vsel %vm451, %v361, %v461
        %v496 = vsel %vm447, %v368, %v477
        %v497 = vsel %vm448, %v368, %v478
        %v498 = vsel %vm449, %v368, %v479
        %v499 = vsel %vm450, %v368, %v480
        %v500 = vsel %vm451, %v368, %v471
        %vm501 = vcmp.lt.s32.totalorder %v285, 1
        %vm502 = vcmp.lt.s32.totalorder %v286, 1
        %vm503 = vcmp.lt.s32.totalorder %v287, 1
        %vm504 = vcmp.lt.s32.totalorder %v288, 1
        %vm505 = vcmp.lt.s32.totalorder %v289, 1
        %v506 = vsel %vm501, 1, 0
        %v507 = vsel %vm502, 1, 0
        %v508 = vsel %vm503, 1, 0
        %v509 = vsel %vm504, 1, 0
        %v510 = vsel %vm505, 1, 0
        %vm511 = vcmp.eq.s32.totalorder %v506, 1
        %vm512 = vcmp.eq.s32.totalorder %v507, 1
        %vm513 = vcmp.eq.s32.totalorder %v508, 1
        %vm514 = vcmp.eq.s32.totalorder %v509, 1
        %vm515 = vcmp.eq.s32.totalorder %v510, 1
        %516 = vrot.lane.b32.xlu0 %v272, 1
        %v517 = vpop.permute.xlu0 %516
        %518 = vrot.lane.b32.xlu0 %v256, 1
        %v519 = vpop.permute.xlu0 %518
        %520 = vrot.lane.b32.xlu0 %v257, 1
        %v521 = vpop.permute.xlu0 %520
        %522 = vrot.lane.b32.xlu0 %v258, 1
        %v523 = vpop.permute.xlu0 %522
        %524 = vrot.lane.b32.xlu0 %v274, 1
        %v525 = vpop.permute.xlu0 %524
        %526 = vrot.lane.b32.xlu0 %v273, 1
        %v527 = vpop.permute.xlu0 %526
        %528 = vrot.lane.b32.xlu0 %v259, 1
        %v529 = vpop.permute.xlu0 %528
        %530 = vrot.lane.b32.xlu0 %v260, 1
        %v531 = vpop.permute.xlu0 %530
        %532 = vrot.lane.b32.xlu0 %v261, 1
        %v533 = vpop.permute.xlu0 %532
        %534 = vrot.lane.b32.xlu0 %v275, 1
        %v535 = vpop.permute.xlu0 %534
        %vm536 = vcmask 7168
        %v537 = vsel %vm536, %v517, %v519
        %v538 = vsel %vm536, %v519, %v521
        %v539 = vsel %vm536, %v521, %v523
        %v540 = vsel %vm536, %v523, %v525
        %v541 = vsel %vm536, %v527, %v529
        %v542 = vsel %vm536, %v529, %v531
        %v543 = vsel %vm536, %v531, %v533
        %v544 = vsel %vm536, %v533, %v535
        %v555 = vsel %vm511, %v322, %v517
        %v556 = vsel %vm512, %v322, %v537
        %v557 = vsel %vm513, %v322, %v538
        %v558 = vsel %vm514, %v322, %v539
        %v559 = vsel %vm515, %v322, %v540
        %v560 = vsel %vm511, %v329, %v527
        %v561 = vsel %vm512, %v329, %v541
        %v562 = vsel %vm513, %v329, %v542
        %v563 = vsel %vm514, %v329, %v543
        %v564 = vsel %vm515, %v329, %v544
        %vm565 = vcmp.lt.s32.totalorder %v285, 2
        %vm566 = vcmp.lt.s32.totalorder %v286, 2
        %vm567 = vcmp.lt.s32.totalorder %v287, 2
        %vm568 = vcmp.lt.s32.totalorder %v288, 2
        %vm569 = vcmp.lt.s32.totalorder %v289, 2
        %v570 = vsel %vm565, 1, 0
        %v571 = vsel %vm566, 1, 0
        %v572 = vsel %vm567, 1, 0
        %v573 = vsel %vm568, 1, 0
        %v574 = vsel %vm569, 1, 0
        %vm575 = vcmp.eq.s32.totalorder %v570, 1
        %vm576 = vcmp.eq.s32.totalorder %v571, 1
        %vm577 = vcmp.eq.s32.totalorder %v572, 1
        %vm578 = vcmp.eq.s32.totalorder %v573, 1
        %vm579 = vcmp.eq.s32.totalorder %v574, 1
        %580 = vrot.lane.b32.xlu0 %v272, 2
        %v581 = vpop.permute.xlu0 %580
        %582 = vrot.lane.b32.xlu0 %v256, 2
        %v583 = vpop.permute.xlu0 %582
        %584 = vrot.lane.b32.xlu0 %v257, 2
        %v585 = vpop.permute.xlu0 %584
        %586 = vrot.lane.b32.xlu0 %v258, 2
        %v587 = vpop.permute.xlu0 %586
        %588 = vrot.lane.b32.xlu0 %v274, 2
        %v589 = vpop.permute.xlu0 %588
        %590 = vrot.lane.b32.xlu0 %v273, 2
        %v591 = vpop.permute.xlu0 %590
        %592 = vrot.lane.b32.xlu0 %v259, 2
        %v593 = vpop.permute.xlu0 %592
        %594 = vrot.lane.b32.xlu0 %v260, 2
        %v595 = vpop.permute.xlu0 %594
        %596 = vrot.lane.b32.xlu0 %v261, 2
        %v597 = vpop.permute.xlu0 %596
        %598 = vrot.lane.b32.xlu0 %v275, 2
        %v599 = vpop.permute.xlu0 %598
        %vm600 = vcmask 15360
        %v601 = vsel %vm600, %v581, %v583
        %v602 = vsel %vm600, %v583, %v585
        %v603 = vsel %vm600, %v585, %v587
        %v604 = vsel %vm600, %v587, %v589
        %v605 = vsel %vm600, %v591, %v593
        %v606 = vsel %vm600, %v593, %v595
        %v607 = vsel %vm600, %v595, %v597
        %v608 = vsel %vm600, %v597, %v599
        %v619 = vsel %vm575, %v322, %v581
        %v620 = vsel %vm576, %v322, %v601
        %v621 = vsel %vm577, %v322, %v602
        %v622 = vsel %vm578, %v322, %v603
        %v623 = vsel %vm579, %v322, %v604
        %v624 = vsel %vm575, %v329, %v591
        %v625 = vsel %vm576, %v329, %v605
        %v626 = vsel %vm577, %v329, %v606
        %v627 = vsel %vm578, %v329, %v607
        %v628 = vsel %vm579, %v329, %v608
        %v629 = vsub.f32 %v427, %v555
        %v630 = vsub.f32 %v428, %v556
        %v631 = vsub.f32 %v429, %v557
        %v632 = vsub.f32 %v430, %v558
        %v633 = vsub.f32 %v431, %v559
        %v634 = vsub.f32 %v432, %v560
        %v635 = vsub.f32 %v433, %v561
        %v636 = vsub.f32 %v434, %v562
        %v637 = vsub.f32 %v435, %v563
        %v638 = vsub.f32 %v436, %v564
        %v639 = vsub.f32 %v491, %v619
        %v640 = vsub.f32 %v492, %v620
        %v641 = vsub.f32 %v493, %v621
        %v642 = vsub.f32 %v494, %v622
        %v643 = vsub.f32 %v495, %v623
        %v644 = vsub.f32 %v496, %v624
        %v645 = vsub.f32 %v497, %v625
        %v646 = vsub.f32 %v498, %v626
        %v647 = vsub.f32 %v499, %v627
        %v648 = vsub.f32 %v500, %v628
        %v649 = vmul.f32 %v639, 2.0
        %v650 = vmul.f32 %v640, 2.0
        %v651 = vmul.f32 %v641, 2.0
        %v652 = vmul.f32 %v642, 2.0
        %v653 = vmul.f32 %v643, 2.0
        %v654 = vmul.f32 %v644, 2.0
        %v655 = vmul.f32 %v645, 2.0
        %v656 = vmul.f32 %v646, 2.0
        %v657 = vmul.f32 %v647, 2.0
        %v658 = vmul.f32 %v648, 2.0
        %v659 = vadd.f32 %v629, %v649
        %v660 = vadd.f32 %v630, %v650
        %v661 = vadd.f32 %v631, %v651
        %v662 = vadd.f32 %v632, %v652
        %v663 = vadd.f32 %v633, %v653
        %v664 = vadd.f32 %v634, %v654
        %v665 = vadd.f32 %v635, %v655
        %v666 = vadd.f32 %v636, %v656
        %v667 = vadd.f32 %v637, %v657
        %v668 = vadd.f32 %v638, %v658
        %v669 = vmul.f32 %v659, 0.1
        %v670 = vmul.f32 %v660, 0.1
        %v671 = vmul.f32 %v661, 0.1
        %v672 = vmul.f32 %v662, 0.1
        %v673 = vmul.f32 %v663, 0.1
        %v674 = vmul.f32 %v664, 0.1
        %v675 = vmul.f32 %v665, 0.1
        %v676 = vmul.f32 %v666, 0.1
        %v677 = vmul.f32 %v667, 0.1
        %v678 = vmul.f32 %v668, 0.1
        %v679 = vsel %vm300, %v669, 0.0
        %v680 = vsel %vm301, %v670, 0.0
        %v681 = vsel %vm302, %v671, 0.0
        %v682 = vsel %vm303, %v672, 0.0
        %v683 = vsel %vm304, %v673, 0.0
        %v684 = vsel %vm300, %v674, 0.0
        %v685 = vsel %vm301, %v675, 0.0
        %v686 = vsel %vm302, %v676, 0.0
        %v687 = vsel %vm303, %v677, 0.0
        %v688 = vsel %vm304, %v678, 0.0
        %699 = vrot.lane.b32.xlu0 %v679, 126
        %v700 = vpop.permute.xlu0 %699
        %701 = vrot.lane.b32.xlu0 %v680, 126
        %v702 = vpop.permute.xlu0 %701
        %703 = vrot.lane.b32.xlu0 %v681, 126
        %v704 = vpop.permute.xlu0 %703
        %705 = vrot.lane.b32.xlu0 %v682, 126
        %v706 = vpop.permute.xlu0 %705
        %707 = vrot.lane.b32.xlu0 %v683, 126
        %v708 = vpop.permute.xlu0 %707
        %709 = vrot.lane.b32.xlu0 %v684, 126
        %v710 = vpop.permute.xlu0 %709
        %711 = vrot.lane.b32.xlu0 %v685, 126
        %v712 = vpop.permute.xlu0 %711
        %713 = vrot.lane.b32.xlu0 %v686, 126
        %v714 = vpop.permute.xlu0 %713
        %715 = vrot.lane.b32.xlu0 %v687, 126
        %v716 = vpop.permute.xlu0 %715
        %717 = vrot.lane.b32.xlu0 %v688, 126
        %v718 = vpop.permute.xlu0 %717
        %v719 = vsel %vm472, %v700, %v702
        %v720 = vsel %vm472, %v702, %v704
        %v721 = vsel %vm472, %v704, %v706
        %v722 = vsel %vm472, %v706, %v708
        %v723 = vsel %vm472, %v710, %v712
        %v724 = vsel %vm472, %v712, %v714
        %v725 = vsel %vm472, %v714, %v716
        %v726 = vsel %vm472, %v716, %v718
        %v737 = vadd.f32 %v719, %v720
        %v738 = vadd.f32 %v737, %v721
        %v739 = vadd.f32 %v738, %v722
        %v740 = vsel %vm255, %v708, 0.0
        %v741 = vadd.f32 %v739, %v740
        %742 = vadd.xlane.f32.xlu0 %v741
        %v743 = vpop.xlane.xlu0 %742
        %v744 = vadd.f32 %v723, %v724
        %v745 = vadd.f32 %v744, %v725
        %v746 = vadd.f32 %v745, %v726
        %v747 = vsel %vm255, %v718, 0.0
        %v748 = vadd.f32 %v746, %v747
        %749 = vadd.xlane.f32.xlu0 %v748
        %v750 = vpop.xlane.xlu0 %749
        %v751 = vsel %vm340, %v669, 0.0
        %v752 = vsel %vm341, %v670, 0.0
        %v753 = vsel %vm342, %v671, 0.0
        %v754 = vsel %vm343, %v672, 0.0
        %v755 = vsel %vm344, %v673, 0.0
        %v756 = vsel %vm340, %v674, 0.0
        %v757 = vsel %vm341, %v675, 0.0
        %v758 = vsel %vm342, %v676, 0.0
        %v759 = vsel %vm343, %v677, 0.0
        %v760 = vsel %vm344, %v678, 0.0
        %771 = vrot.lane.b32.xlu0 %v751, 126
        %v772 = vpop.permute.xlu0 %771
        %773 = vrot.lane.b32.xlu0 %v752, 126
        %v774 = vpop.permute.xlu0 %773
        %775 = vrot.lane.b32.xlu0 %v753, 126
        %v776 = vpop.permute.xlu0 %775
        %777 = vrot.lane.b32.xlu0 %v754, 126
        %v778 = vpop.permute.xlu0 %777
        %779 = vrot.lane.b32.xlu0 %v755, 126
        %v780 = vpop.permute.xlu0 %779
        %781 = vrot.lane.b32.xlu0 %v756, 126
        %v782 = vpop.permute.xlu0 %781
        %783 = vrot.lane.b32.xlu0 %v757, 126
        %v784 = vpop.permute.xlu0 %783
        %785 = vrot.lane.b32.xlu0 %v758, 126
        %v786 = vpop.permute.xlu0 %785
        %787 = vrot.lane.b32.xlu0 %v759, 126
        %v788 = vpop.permute.xlu0 %787
        %789 = vrot.lane.b32.xlu0 %v760, 126
        %v790 = vpop.permute.xlu0 %789
        %v791 = vsel %vm472, %v772, %v774
        %v792 = vsel %vm472, %v774, %v776
        %v793 = vsel %vm472, %v776, %v778
        %v794 = vsel %vm472, %v778, %v780
        %v795 = vsel %vm472, %v782, %v784
        %v796 = vsel %vm472, %v784, %v786
        %v797 = vsel %vm472, %v786, %v788
        %v798 = vsel %vm472, %v788, %v790
        %v809 = vadd.f32 %v791, %v792
        %v810 = vadd.f32 %v809, %v793
        %v811 = vadd.f32 %v810, %v794
        %v812 = vsel %vm255, %v780, 0.0
        %v813 = vadd.f32 %v811, %v812
        %814 = vadd.xlane.f32.xlu0 %v813
        %v815 = vpop.xlane.xlu0 %814
        %v816 = vadd.f32 %v795, %v796
        %v817 = vadd.f32 %v816, %v797
        %v818 = vadd.f32 %v817, %v798
        %v819 = vsel %vm255, %v790, 0.0
        %v820 = vadd.f32 %v818, %v819
        %821 = vadd.xlane.f32.xlu0 %v820
        %v822 = vpop.xlane.xlu0 %821
        %833 = vrot.lane.b32.xlu0 %v669, 127
        %v834 = vpop.permute.xlu0 %833
        %835 = vrot.lane.b32.xlu0 %v670, 127
        %v836 = vpop.permute.xlu0 %835
        %837 = vrot.lane.b32.xlu0 %v671, 127
        %v838 = vpop.permute.xlu0 %837
        %839 = vrot.lane.b32.xlu0 %v672, 127
        %v840 = vpop.permute.xlu0 %839
        %841 = vrot.lane.b32.xlu0 %v673, 127
        %v842 = vpop.permute.xlu0 %841
        %843 = vrot.lane.b32.xlu0 %v674, 127
        %v844 = vpop.permute.xlu0 %843
        %845 = vrot.lane.b32.xlu0 %v675, 127
        %v846 = vpop.permute.xlu0 %845
        %847 = vrot.lane.b32.xlu0 %v676, 127
        %v848 = vpop.permute.xlu0 %847
        %849 = vrot.lane.b32.xlu0 %v677, 127
        %v850 = vpop.permute.xlu0 %849
        %851 = vrot.lane.b32.xlu0 %v678, 127
        %v852 = vpop.permute.xlu0 %851
        %v853 = vsel %vm408, %v834, %v836
        %v854 = vsel %vm408, %v836, %v838
        %v855 = vsel %vm408, %v838, %v840
        %v856 = vsel %vm408, %v840, %v842
        %v857 = vsel %vm408, %v844, %v846
        %v858 = vsel %vm408, %v846, %v848
        %v859 = vsel %vm408, %v848, %v850
        %v860 = vsel %vm408, %v850, %v852
        %v871 = vsel %vm379, %v815, %v853
        %v872 = vsel %vm380, %v815, %v854
        %v873 = vsel %vm381, %v815, %v855
        %v874 = vsel %vm382, %v815, %v856
        %v875 = vsel %vm383, %v815, %v842
        %v876 = vsel %vm379, %v822, %v857
        %v877 = vsel %vm380, %v822, %v858
        %v878 = vsel %vm381, %v822, %v859
        %v879 = vsel %vm382, %v822, %v860
        %v880 = vsel %vm383, %v822, %v852
        %881 = vrot.lane.b32.xlu0 %v669, 126
        %v882 = vpop.permute.xlu0 %881
        %883 = vrot.lane.b32.xlu0 %v670, 126
        %v884 = vpop.permute.xlu0 %883
        %885 = vrot.lane.b32.xlu0 %v671, 126
        %v886 = vpop.permute.xlu0 %885
        %887 = vrot.lane.b32.xlu0 %v672, 126
        %v888 = vpop.permute.xlu0 %887
        %889 = vrot.lane.b32.xlu0 %v673, 126
        %v890 = vpop.permute.xlu0 %889
        %891 = vrot.lane.b32.xlu0 %v674, 126
        %v892 = vpop.permute.xlu0 %891
        %893 = vrot.lane.b32.xlu0 %v675, 126
        %v894 = vpop.permute.xlu0 %893
        %895 = vrot.lane.b32.xlu0 %v676, 126
        %v896 = vpop.permute.xlu0 %895
        %897 = vrot.lane.b32.xlu0 %v677, 126
        %v898 = vpop.permute.xlu0 %897
        %899 = vrot.lane.b32.xlu0 %v678, 126
        %v900 = vpop.permute.xlu0 %899
        %v901 = vsel %vm472, %v882, %v884
        %v902 = vsel %vm472, %v884, %v886
        %v903 = vsel %vm472, %v886, %v888
        %v904 = vsel %vm472, %v888, %v890
        %v905 = vsel %vm472, %v892, %v894
        %v906 = vsel %vm472, %v894, %v896
        %v907 = vsel %vm472, %v896, %v898
        %v908 = vsel %vm472, %v898, %v900
        %v919 = vsel %vm447, %v815, %v901
        %v920 = vsel %vm448, %v815, %v902
        %v921 = vsel %vm449, %v815, %v903
        %v922 = vsel %vm450, %v815, %v904
        %v923 = vsel %vm451, %v815, %v890
        %v924 = vsel %vm447, %v822, %v905
        %v925 = vsel %vm448, %v822, %v906
        %v926 = vsel %vm449, %v822, %v907
        %v927 = vsel %vm450, %v822, %v908
        %v928 = vsel %vm451, %v822, %v900
        %929 = vrot.lane.b32.xlu0 %v669, 1
        %v930 = vpop.permute.xlu0 %929
        %931 = vrot.lane.b32.xlu0 %v670, 1
        %v932 = vpop.permute.xlu0 %931
        %933 = vrot.lane.b32.xlu0 %v671, 1
        %v934 = vpop.permute.xlu0 %933
        %935 = vrot.lane.b32.xlu0 %v672, 1
        %v936 = vpop.permute.xlu0 %935
        %937 = vrot.lane.b32.xlu0 %v673, 1
        %v938 = vpop.permute.xlu0 %937
        %939 = vrot.lane.b32.xlu0 %v674, 1
        %v940 = vpop.permute.xlu0 %939
        %941 = vrot.lane.b32.xlu0 %v675, 1
        %v942 = vpop.permute.xlu0 %941
        %943 = vrot.lane.b32.xlu0 %v676, 1
        %v944 = vpop.permute.xlu0 %943
        %945 = vrot.lane.b32.xlu0 %v677, 1
        %v946 = vpop.permute.xlu0 %945
        %947 = vrot.lane.b32.xlu0 %v678, 1
        %v948 = vpop.permute.xlu0 %947
        %v949 = vsel %vm536, %v930, %v932
        %v950 = vsel %vm536, %v932, %v934
        %v951 = vsel %vm536, %v934, %v936
        %v952 = vsel %vm536, %v936, %v938
        %v953 = vsel %vm536, %v940, %v942
        %v954 = vsel %vm536, %v942, %v944
        %v955 = vsel %vm536, %v944, %v946
        %v956 = vsel %vm536, %v946, %v948
        %v967 = vsel %vm511, %v743, %v930
        %v968 = vsel %vm512, %v743, %v949
        %v969 = vsel %vm513, %v743, %v950
        %v970 = vsel %vm514, %v743, %v951
        %v971 = vsel %vm515, %v743, %v952
        %v972 = vsel %vm511, %v750, %v940
        %v973 = vsel %vm512, %v750, %v953
        %v974 = vsel %vm513, %v750, %v954
        %v975 = vsel %vm514, %v750, %v955
        %v976 = vsel %vm515, %v750, %v956
        %977 = vrot.lane.b32.xlu0 %v669, 2
        %v978 = vpop.permute.xlu0 %977
        %979 = vrot.lane.b32.xlu0 %v670, 2
        %v980 = vpop.permute.xlu0 %979
        %981 = vrot.lane.b32.xlu0 %v671, 2
        %v982 = vpop.permute.xlu0 %981
        %983 = vrot.lane.b32.xlu0 %v672, 2
        %v984 = vpop.permute.xlu0 %983
        %985 = vrot.lane.b32.xlu0 %v673, 2
        %v986 = vpop.permute.xlu0 %985
        %987 = vrot.lane.b32.xlu0 %v674, 2
        %v988 = vpop.permute.xlu0 %987
        %989 = vrot.lane.b32.xlu0 %v675, 2
        %v990 = vpop.permute.xlu0 %989
        %991 = vrot.lane.b32.xlu0 %v676, 2
        %v992 = vpop.permute.xlu0 %991
        %993 = vrot.lane.b32.xlu0 %v677, 2
        %v994 = vpop.permute.xlu0 %993
        %995 = vrot.lane.b32.xlu0 %v678, 2
        %v996 = vpop.permute.xlu0 %995
        %v997 = vsel %vm600, %v978, %v980
        %v998 = vsel %vm600, %v980, %v982
        %v999 = vsel %vm600, %v982, %v984
        %v1000 = vsel %vm600, %v984, %v986
        %v1001 = vsel %vm600, %v988, %v990
        %v1002 = vsel %vm600, %v990, %v992
        %v1003 = vsel %vm600, %v992, %v994
        %v1004 = vsel %vm600, %v994, %v996
        %v1015 = vsel %vm575, %v743, %v978
        %v1016 = vsel %vm576, %v743, %v997
        %v1017 = vsel %vm577, %v743, %v998
        %v1018 = vsel %vm578, %v743, %v999
        %v1019 = vsel %vm579, %v743, %v1000
        %v1020 = vsel %vm575, %v750, %v988
        %v1021 = vsel %vm576, %v750, %v1001
        %v1022 = vsel %vm577, %v750, %v1002
        %v1023 = vsel %vm578, %v750, %v1003
        %v1024 = vsel %vm579, %v750, %v1004
        %v1025 = vsub.f32 %v871, %v967
        %v1026 = vsub.f32 %v872, %v968
        %v1027 = vsub.f32 %v873, %v969
        %v1028 = vsub.f32 %v874, %v970
        %v1029 = vsub.f32 %v875, %v971
        %v1030 = vsub.f32 %v876, %v972
        %v1031 = vsub.f32 %v877, %v973
        %v1032 = vsub.f32 %v878, %v974
        %v1033 = vsub.f32 %v879, %v975
        %v1034 = vsub.f32 %v880, %v976
        %v1035 = vsub.f32 %v919, %v1015
        %v1036 = vsub.f32 %v920, %v1016
        %v1037 = vsub.f32 %v921, %v1017
        %v1038 = vsub.f32 %v922, %v1018
        %v1039 = vsub.f32 %v923, %v1019
        %v1040 = vsub.f32 %v924, %v1020
        %v1041 = vsub.f32 %v925, %v1021
        %v1042 = vsub.f32 %v926, %v1022
        %v1043 = vsub.f32 %v927, %v1023
        %v1044 = vsub.f32 %v928, %v1024
        %v1045 = vmul.f32 %v1035, 2.0
        %v1046 = vmul.f32 %v1036, 2.0
        %v1047 = vmul.f32 %v1037, 2.0
        %v1048 = vmul.f32 %v1038, 2.0
        %v1049 = vmul.f32 %v1039, 2.0
        %v1050 = vmul.f32 %v1040, 2.0
        %v1051 = vmul.f32 %v1041, 2.0
        %v1052 = vmul.f32 %v1042, 2.0
        %v1053 = vmul.f32 %v1043, 2.0
        %v1054 = vmul.f32 %v1044, 2.0
        %v1055 = vadd.f32 %v1025, %v1045
        %v1056 = vadd.f32 %v1026, %v1046
        %v1057 = vadd.f32 %v1027, %v1047
        %v1058 = vadd.f32 %v1028, %v1048
        %v1059 = vadd.f32 %v1029, %v1049
        %v1060 = vadd.f32 %v1030, %v1050
        %v1061 = vadd.f32 %v1031, %v1051
        %v1062 = vadd.f32 %v1032, %v1052
        %v1063 = vadd.f32 %v1033, %v1053
        %v1064 = vadd.f32 %v1034, %v1054
        %v1065 = vmul.f32 %v1055, 0.1
        %v1066 = vmul.f32 %v1056, 0.1
        %v1067 = vmul.f32 %v1057, 0.1
        %v1068 = vmul.f32 %v1058, 0.1
        %v1069 = vmul.f32 %v1059, 0.1
        %v1070 = vmul.f32 %v1060, 0.1
        %v1071 = vmul.f32 %v1061, 0.1
        %v1072 = vmul.f32 %v1062, 0.1
        %v1073 = vmul.f32 %v1063, 0.1
        %v1074 = vmul.f32 %v1064, 0.1
        %1075 = vst [vmem:[%s206] sm:$0xff] %v221
        %1076 = vst [vmem:[%s206 + $0x8] sm:$0xff] %v222
        %1077 = vst [vmem:[%s206 + $0x10] sm:$0xff] %v223
        %1078 = vst [vmem:[%s206 + $0x18] sm:$0xff] %v224
        %1079 = vst [vmem:[%s206 + $0x20] sm:$0xff] %v225
        %1080 = vst [vmem:[%s206 + $0x28] sm:$0xff] %v226
        %1081 = vst [vmem:[%s206 + $0x30] sm:$0xff] %v227
        %1082 = vst [vmem:[%s206 + $0x38] sm:$0xff] %v228
        %1083 = vrot.lane.b32.xlu0 %v669, 124
        %v1084 = vpop.permute.xlu0 %1083
        %1085 = vrot.lane.b32.xlu0 %v670, 124
        %v1086 = vpop.permute.xlu0 %1085
        %1087 = vrot.lane.b32.xlu0 %v671, 124
        %v1088 = vpop.permute.xlu0 %1087
        %1089 = vrot.lane.b32.xlu0 %v672, 124
        %v1090 = vpop.permute.xlu0 %1089
        %1091 = vrot.lane.b32.xlu0 %v673, 124
        %v1092 = vpop.permute.xlu0 %1091
        %1093 = vrot.lane.b32.xlu0 %v674, 124
        %v1094 = vpop.permute.xlu0 %1093
        %1095 = vrot.lane.b32.xlu0 %v675, 124
        %v1096 = vpop.permute.xlu0 %1095
        %1097 = vrot.lane.b32.xlu0 %v676, 124
        %v1098 = vpop.permute.xlu0 %1097
        %1099 = vrot.lane.b32.xlu0 %v677, 124
        %v1100 = vpop.permute.xlu0 %1099
        %1101 = vrot.lane.b32.xlu0 %v678, 124
        %v1102 = vpop.permute.xlu0 %1101
        %vm1103 = vcmask 1014784
        %v1104 = vsel %vm1103, %v1084, %v1086
        %v1105 = vsel %vm1103, %v1086, %v1088
        %v1106 = vsel %vm1103, %v1088, %v1090
        %v1107 = vsel %vm1103, %v1090, %v1092
        %v1108 = vsel %vm1103, %v1094, %v1096
        %v1109 = vsel %vm1103, %v1096, %v1098
        %v1110 = vsel %vm1103, %v1098, %v1100
        %v1111 = vsel %vm1103, %v1100, %v1102
        %s1120 = scalar_lea.vmem %s206, 64 [#allocation5]
        %1121 = vst [vmem:[%s1120] sm:$0xff] %v1104
        %1122 = vst [vmem:[%s1120 + $0x8] sm:$0xff] %v1105
        %1123 = vst [vmem:[%s1120 + $0x10] sm:$0xff] %v1106
        %1124 = vst [vmem:[%s1120 + $0x18] sm:$0xff] %v1107
        %1125 = vst [vmem:[%s1120 + $0x20] sm:$0xff] %v1108
        %1126 = vst [vmem:[%s1120 + $0x28] sm:$0xff] %v1109
        %1127 = vst [vmem:[%s1120 + $0x30] sm:$0xff] %v1110
        %1128 = vst [vmem:[%s1120 + $0x38] sm:$0xff] %v1111
        %1139 = vrot.lane.b32.xlu0 %v1065, 124
        %v1140 = vpop.permute.xlu0 %1139
        %1141 = vrot.lane.b32.xlu0 %v1066, 124
        %v1142 = vpop.permute.xlu0 %1141
        %1143 = vrot.lane.b32.xlu0 %v1067, 124
        %v1144 = vpop.permute.xlu0 %1143
        %1145 = vrot.lane.b32.xlu0 %v1068, 124
        %v1146 = vpop.permute.xlu0 %1145
        %1147 = vrot.lane.b32.xlu0 %v1069, 124
        %v1148 = vpop.permute.xlu0 %1147
        %1149 = vrot.lane.b32.xlu0 %v1070, 124
        %v1150 = vpop.permute.xlu0 %1149
        %1151 = vrot.lane.b32.xlu0 %v1071, 124
        %v1152 = vpop.permute.xlu0 %1151
        %1153 = vrot.lane.b32.xlu0 %v1072, 124
        %v1154 = vpop.permute.xlu0 %1153
        %1155 = vrot.lane.b32.xlu0 %v1073, 124
        %v1156 = vpop.permute.xlu0 %1155
        %1157 = vrot.lane.b32.xlu0 %v1074, 124
        %v1158 = vpop.permute.xlu0 %1157
        %v1159 = vsel %vm1103, %v1140, %v1142
        %v1160 = vsel %vm1103, %v1142, %v1144
        %v1161 = vsel %vm1103, %v1144, %v1146
        %v1162 = vsel %vm1103, %v1146, %v1148
        %v1163 = vsel %vm1103, %v1150, %v1152
        %v1164 = vsel %vm1103, %v1152, %v1154
        %v1165 = vsel %vm1103, %v1154, %v1156
        %v1166 = vsel %vm1103, %v1156, %v1158
        %s1175 = scalar_lea.vmem %s206, 128 [#allocation5]
        %1176 = vst [vmem:[%s1175] sm:$0xff] %v1159
        %1177 = vst [vmem:[%s1175 + $0x8] sm:$0xff] %v1160
        %1178 = vst [vmem:[%s1175 + $0x10] sm:$0xff] %v1161
        %1179 = vst [vmem:[%s1175 + $0x18] sm:$0xff] %v1162
        %1180 = vst [vmem:[%s1175 + $0x20] sm:$0xff] %v1163
        %1181 = vst [vmem:[%s1175 + $0x28] sm:$0xff] %v1164
        %1182 = vst [vmem:[%s1175 + $0x30] sm:$0xff] %v1165
        %1183 = vst [vmem:[%s1175 + $0x38] sm:$0xff] %v1166
        %s1184 = sand.u32 %s97, 1
        %s1185 = scalar_lea.sflag [#allocation4], %s1184
        %s1186 = sand.u32 %s97, 1
        %s1187 = smul.addr %s1186, 192
        %s1188 = scalar_lea.vmem [#allocation5], %s1187
        // Predicated region
        $region33: #{tpu_custom_call.1} parent=27 // pred_check
          %p1189 = pneg %p107
        $region34: #{tpu_custom_call.1} parent=27 // pred_check_branch
          %1191 = sbr.rel (%p1189) target = $region36
        $region35: #{tpu_custom_call.1} parent=27 // pred_region
          #allocation7 [shape = 'u32[6]{0}', space=smem, size = 0x18, scoped, tag = 'DMA stride descriptor']
          %s1192 = smul.u32 2, %s23
          %s1193 = smul.u32 4, %s24
          %s1195 = ssub.s32 3072, 3072
          %1196 = vsyncadd %s1185, %s1195
          %s1197 = smul.addr %s1192, 4
          %s1198 = sadd.s32 %s1193, %s1197
          %s1199 = smul.addr %s1198, 128
          %s1200 = scalar_lea.hbm %s2, %s1199
          %s1202 = sshll.u32 1, 14
          %s1203 = sxor.u32 4294967295, %s1202
          %s1206 = sshll.u32 7, 18
          %s1207 = sxor.u32 4294967295, %s1206
          %s1208 = sand.u32 0, %s1207
          %s1210 = sor.u32 %s1208, 0
          %s1211 = sshll.u32 %s1188, 4
          %s1212 = int_to_ptr.vmem [resolvable:$true] %s1211
          %1218 = sst [smem:[#allocation7]] 1024
          %s1219 = scalar_lea.smem [#allocation7], 1
          %1220 = sst [smem:[%s1219]] 5120
          %s1221 = scalar_lea.smem [#allocation7], 2
          %1222 = sst [smem:[%s1221]] 2
          %s1223 = scalar_lea.smem [#allocation7], 3
          %1224 = sst [smem:[%s1223]] 512
          %s1225 = scalar_lea.smem [#allocation7], 4
          %1226 = sst [smem:[%s1225]] 512
          %s1227 = scalar_lea.smem [#allocation7], 5
          %1228 = sst [smem:[%s1227]] 32
          %1230 = dma.general %s1212, 3072, %s1200, %s1185, 131072, [#allocation7], %s1210, 0
        $region36: #{tpu_custom_call.1} parent=27 // pred_fallthru
          _
      $region28: #{tpu_custom_call.1} parent=5 // pred_fallthru
        _
      %p1231 = scmp.le.s32.totalorder 2, %s14
      // Predicated region
      $region37: #{tpu_custom_call.1} parent=5 // pred_check
        %p1232 = pneg %p1231
      $region38: #{tpu_custom_call.1} parent=5 // pred_check_branch
        %1234 = sbr.rel (%p1232) target = $region40
      $region39: #{tpu_custom_call.1} parent=5 // pred_region
        %s1235 = ssub.s32 %s14, 2
        // Predicated region
        $region41: #{tpu_custom_call.1} parent=39 // pred_check
          %p1236 = pneg %p113
        $region42: #{tpu_custom_call.1} parent=39 // pred_check_branch
          %1238 = sbr.rel (%p1236) target = $region44
        $region43: #{tpu_custom_call.1} parent=39 // pred_region
          %s1239 = sand.u32 %s98, 1
          %s1240 = scalar_lea.sflag [#allocation4], %s1239
          %s1241 = sand.u32 %s98, 1
          %s1242 = smul.addr %s1241, 192
          %s1243 = scalar_lea.vmem [#allocation5], %s1242
          %1244 = dma.done %s1240, 3072
        $region44: #{tpu_custom_call.1} parent=39 // pred_fallthru
          _
      $region40: #{tpu_custom_call.1} parent=5 // pred_fallthru
        _
    $region6: #{tpu_custom_call.1} parent=1 // loop_footer
      %s18 = sadd.s32 1, %s14
    $region7: #{tpu_custom_call.1} parent=1 // loop_footer_branch
      %13 = sbr.rel target = $region3
    $region8: #{tpu_custom_call.1} parent=1 // loop_exit
      _
    %1245 = vsyncpa [#allocation3], 1
    %s1246 = scalar_lea.sflag [#allocation3], 1
    %1247 = vsyncpa %s1246, 1
    %1248 = vsyncpa [#allocation4], 1
    %s1249 = scalar_lea.sflag [#allocation4], 1
    %1250 = vsyncpa %s1249, 1

</llo_original>
